<compile_context>
chip_gen: v5e
topology: v5e:2x2
jax: 0.10.0
libtpu: 0.0.40
codegen_flags: <defaults>
</compile_context>

<pallas_src>
import functools
import math

import jax
import jax.numpy as jnp
from jax import lax
from jax.experimental import pallas as pl
from jax.experimental.pallas import tpu as pltpu


# --------------------------------- kernel ------------------------------------
def _qkv_attention_kernel(qkv_ref, out_ref, *, ch, scale_sq):
    # qkv_ref: (1, 3*ch, T) block for one (batch, head); out_ref: (1, ch, T).
    q = qkv_ref[0, 0 * ch:1 * ch, :]          # (ch, T)
    k = qkv_ref[0, 1 * ch:2 * ch, :]          # (ch, T)
    v = qkv_ref[0, 2 * ch:3 * ch, :]          # (ch, T)

    # scores[t, s] = scale^2 * sum_c q[c, t] * k[c, s]   (bf16 MXU, f32 acc)
    scores = lax.dot_general(
        q.astype(jnp.bfloat16), k.astype(jnp.bfloat16),
        dimension_numbers=(((0,), (0,)), ((), ())),
        preferred_element_type=jnp.float32) * scale_sq   # (T, T) f32

    # Numerically stable row softmax, entirely in f32.
    m = jnp.max(scores, axis=-1, keepdims=True)
    p = jnp.exp(scores - m)
    denom = jnp.sum(p, axis=-1, keepdims=True)
    p = p / denom

    # a[c, t] = sum_s v[c, s] * p[t, s]                  (bf16 MXU, f32 acc)
    a = lax.dot_general(
        v.astype(jnp.bfloat16), p.astype(jnp.bfloat16),
        dimension_numbers=(((1,), (1,)), ((), ())),
        preferred_element_type=jnp.float32)              # (ch, T)

    out_ref[0] = a.astype(out_ref.dtype)


# --------------------------------- wrapper ------------------------------------
def qkv_attention_forward(qkv, n_heads):
    """qkv: (N, H*3*C, T) -> (N, H*C, T); matches QKVAttentionLegacy.forward."""
    N, width, T = qkv.shape
    assert width % (3 * n_heads) == 0
    ch = width // (3 * n_heads)
    bh = N * n_heads
    scale_sq = 1.0 / math.sqrt(ch)            # == (1/sqrt(sqrt(ch)))**2

    qkv3 = qkv.reshape(bh, 3 * ch, T)         # free reshape, no transpose / HBM copy

    kernel = functools.partial(_qkv_attention_kernel, ch=ch, scale_sq=scale_sq)

    out3 = pl.pallas_call(
        kernel,
        out_shape=jax.ShapeDtypeStruct((bh, ch, T), qkv.dtype),
        grid=(bh,),
        in_specs=[pl.BlockSpec((1, 3 * ch, T), lambda b: (b, 0, 0))],
        out_specs=pl.BlockSpec((1, ch, T), lambda b: (b, 0, 0)),
        compiler_params=pltpu.CompilerParams(
            dimension_semantics=("parallel",),
            vmem_limit_bytes=32 * 1024 * 1024),
    )(qkv3)

    return out3.reshape(N, n_heads * ch, T)   # free reshape


# ------------------------------ references ------------------------------------
def _reference_f32(qkv, n_heads):
    """Pure-f32, PyTorch-faithful reference."""
    N, width, T = qkv.shape
    ch = width // (3 * n_heads)
    r = qkv.reshape(N * n_heads, 3 * ch, T)
    q, k, v = r[:, :ch], r[:, ch:2 * ch], r[:, 2 * ch:]
    scale = 1.0 / math.sqrt(math.sqrt(ch))
    w = jnp.einsum('bct,bcs->bts', q * scale, k * scale,
                   precision=lax.Precision.HIGHEST)
    w = jax.nn.softmax(w.astype(jnp.float32), axis=-1)
    a = jnp.einsum('bts,bcs->bct', w, v, precision=lax.Precision.HIGHEST)
    return a.reshape(N, n_heads * ch, T)


def _reference_bf16_matmul(qkv, n_heads):
    """Reference using the kernel's bf16-operand / f32-accumulate matmul contract."""
    N, width, T = qkv.shape
    ch = width // (3 * n_heads)
    r = qkv.reshape(N * n_heads, 3 * ch, T)
    q, k, v = r[:, :ch], r[:, ch:2 * ch], r[:, 2 * ch:]
    scale_sq = 1.0 / math.sqrt(ch)
    s = jnp.einsum('bct,bcs->bts',
                   q.astype(jnp.bfloat16), k.astype(jnp.bfloat16),
                   preferred_element_type=jnp.float32) * scale_sq
    p = jax.nn.softmax(s, axis=-1)
    a = jnp.einsum('bts,bcs->bct',
                   p.astype(jnp.bfloat16), v.astype(jnp.bfloat16),
                   preferred_element_type=jnp.float32)
    return a.reshape(N, n_heads * ch, T).astype(qkv.dtype)


# ----------------------------------- main --------------------------------------
if __name__ == "__main__":
    # Small shapes consistent with the module: N=2, n_heads=4, ch=32 -> width=384,
    # seq length T=128 (lane-aligned).
    N, n_heads, ch, T = 2, 4, 32, 128
    width = n_heads * 3 * ch

    qkv = jax.random.normal(jax.random.PRNGKey(0), (N, width, T), jnp.float32)

    out = jax.block_until_ready(qkv_attention_forward(qkv, n_heads))

    assert out.shape == (N, n_heads * ch, T), out.shape
    assert bool(jnp.all(jnp.isfinite(out)))

    # Tight check vs the matched-precision reference (layout / indexing bugs
    # would show up as O(0.1 - 1) errors; this bound is two orders tighter).
    err_matched = float(jnp.max(jnp.abs(out - _reference_bf16_matmul(qkv, n_heads))))
    assert err_matched < 1e-3, f"matched-precision max abs err = {err_matched}"

    # Loose check vs the pure-f32 reference; gap == deliberate bf16 MXU quantization.
    err_f32 = float(jnp.max(jnp.abs(out - _reference_f32(qkv, n_heads))))
    assert err_f32 < 5e-2, f"f32-reference max abs err = {err_f32}"

    print("KERNEL_OK")
</pallas_src>

<mosaic_0001>
module attributes {stable_mosaic.version = 11 : i64} {
  func.func @_qkv_attention_kernel(%arg0: i32, %arg1: memref<1x96x128xf32, #tpu.memory_space<vmem>>, %arg2: memref<1x32x128xf32, #tpu.memory_space<vmem>>) attributes {dimension_semantics = [#tpu.dimension_semantics<parallel>], iteration_bounds = array<i64: 8>, scalar_prefetch = 0 : i64, scratch_operands = 0 : i64, tpu.core_type = #tpu.core_type<tc>, window_params = [{transform_indices = @transform_0, window_bounds = array<i64: 1, 96, 128>}, {transform_indices = @transform_1, window_bounds = array<i64: 1, 32, 128>}]} {
    %c0 = arith.constant 0 : index
    %c0_0 = arith.constant 0 : index
    %c0_1 = arith.constant 0 : index
    %0 = vector.load %arg1[%c0, %c0_0, %c0_1] : memref<1x96x128xf32, #tpu.memory_space<vmem>>, vector<1x32x128xf32>
    %1 = vector.shape_cast %0 : vector<1x32x128xf32> to vector<32x128xf32>
    %c0_2 = arith.constant 0 : index
    %c32 = arith.constant 32 : index
    %c0_3 = arith.constant 0 : index
    %2 = vector.load %arg1[%c0_2, %c32, %c0_3] : memref<1x96x128xf32, #tpu.memory_space<vmem>>, vector<1x32x128xf32>
    %3 = vector.shape_cast %2 : vector<1x32x128xf32> to vector<32x128xf32>
    %c0_4 = arith.constant 0 : index
    %c64 = arith.constant 64 : index
    %c0_5 = arith.constant 0 : index
    %4 = vector.load %arg1[%c0_4, %c64, %c0_5] : memref<1x96x128xf32, #tpu.memory_space<vmem>>, vector<1x32x128xf32>
    %5 = vector.shape_cast %4 : vector<1x32x128xf32> to vector<32x128xf32>
    %6 = arith.truncf %1 : vector<32x128xf32> to vector<32x128xbf16>
    %7 = arith.truncf %3 : vector<32x128xf32> to vector<32x128xbf16>
    %cst = arith.constant dense<0.000000e+00> : vector<128x128xf32>
    %8 = tpu.matmul %6, %7, %cst {dimension_numbers = #tpu.dot_dimension_numbers<[0], [0], [1], [1], [0, 1, 1, 1], [], []>} : vector<32x128xbf16>, vector<32x128xbf16>, vector<128x128xf32> -> vector<128x128xf32>
    %cst_6 = arith.constant 0.176776692 : f32
    %9 = vector.broadcast %cst_6 : f32 to vector<128x128xf32>
    %10 = arith.mulf %8, %9 : vector<128x128xf32>
    %cst_7 = arith.constant dense<0xFF800000> : vector<128xf32>
    %11 = vector.multi_reduction <maximumf>, %10, %cst_7 [1] : vector<128x128xf32> to vector<128xf32>
    %12 = vector.shape_cast %11 : vector<128xf32> to vector<128x1xf32>
    %13 = vector.broadcast %12 : vector<128x1xf32> to vector<128x128xf32>
    %14 = arith.subf %10, %13 : vector<128x128xf32>
    %15 = math.exp %14 : vector<128x128xf32>
    %cst_8 = arith.constant dense<0.000000e+00> : vector<128xf32>
    %16 = vector.multi_reduction <add>, %15, %cst_8 [1] : vector<128x128xf32> to vector<128xf32>
    %17 = vector.shape_cast %16 : vector<128xf32> to vector<128x1xf32>
    %18 = vector.broadcast %17 : vector<128x1xf32> to vector<128x128xf32>
    %19 = arith.divf %15, %18 : vector<128x128xf32>
    %20 = arith.truncf %5 : vector<32x128xf32> to vector<32x128xbf16>
    %21 = arith.truncf %19 : vector<128x128xf32> to vector<128x128xbf16>
    %cst_9 = arith.constant dense<0.000000e+00> : vector<32x128xf32>
    %22 = tpu.matmul %20, %21, %cst_9 {dimension_numbers = #tpu.dot_dimension_numbers<[1], [1], [0], [0], [0, 0, 1, 0], [], []>} : vector<32x128xbf16>, vector<128x128xbf16>, vector<32x128xf32> -> vector<32x128xf32>
    %c0_10 = arith.constant 0 : index
    %c0_11 = arith.constant 0 : index
    %c0_12 = arith.constant 0 : index
    %23 = vector.load %arg2[%c0_10, %c0_11, %c0_12] : memref<1x32x128xf32, #tpu.memory_space<vmem>>, vector<1x32x128xf32>
    %24 = vector.shape_cast %23 : vector<1x32x128xf32> to vector<32x128xf32>
    %25 = vector.shape_cast %22 : vector<32x128xf32> to vector<1x32x128xf32>
    tpu.vector_store %arg2[%c0_10, %c0_11, %c0_12], %25 {strides = array<i32>} : memref<1x32x128xf32, #tpu.memory_space<vmem>>, vector<1x32x128xf32>,
    return
  }
  func.func @transform_0(%arg0: i32) -> (i32, i32, i32) {
    %c0_i32 = arith.constant 0 : i32
    %c0_i32_0 = arith.constant 0 : i32
    %c0_i32_1 = arith.constant 0 : i32
    return %arg0, %c0_i32, %c0_i32_0 : i32, i32, i32
  }
  func.func @transform_1(%arg0: i32) -> (i32, i32, i32) {
    %c0_i32 = arith.constant 0 : i32
    %c0_i32_0 = arith.constant 0 : i32
    %c0_i32_1 = arith.constant 0 : i32
    return %arg0, %c0_i32, %c0_i32_0 : i32, i32, i32
  }
}

</mosaic_0001>

<llo_original>
// kernel: tpu_custom_call.1
$region0: #{tpu_custom_call.1}
  #allocation0 [shape = 'u32[]', space=smem, size = 0x4, offset = 0x4, fixed_abs, tag = 'smem constant byte address 0x4 - core index']
  #allocation1 [shape = 'u32[72,128]{1,0:T(1,128)}', space=vmem, size = 0x9000, scoped, tag = 'internal scratch']
  %s0 = inlined_call_operand.hbm [shape: f32[8,96,128], index: 0, kind: input, shape index: {}]
  %s1 = inlined_call_operand.hbm [shape: f32[8,32,128], index: 1, kind: output, shape index: {}]
  %s2 = sld [smem:[#allocation0]]
  $region41: #{tpu_custom_call.1} parent=0
    _
  %s4 = ssub.s32 1, %s2
  %s5 = scalar_select 0, %s4, %s2
  $region1: #{tpu_custom_call.1} parent=0
    #allocation2 [shape = 'u8[98304]{0}', space=vmem, size = 0x18000, scoped, tag = 'input window, operand 0']
    #allocation3 [shape = 's32[2]{0}', space=sflag, size = 0x8, scoped, tag = 'scoped memory for tpu_custom_call.1']
    #allocation4 [shape = 's32[2]{0}', space=sflag, size = 0x8, scoped, tag = 'scoped memory for tpu_custom_call.1']
    #allocation5 [shape = 'u8[32768]{0}', space=vmem, size = 0x8000, scoped, tag = 'output window, operand 0']
    %6 = vsyncpa [#allocation3], 0
    %s7 = scalar_lea.sflag [#allocation3], 1
    %8 = vsyncpa %s7, 0
    %9 = vsyncpa [#allocation4], 0
    %s10 = scalar_lea.sflag [#allocation4], 1
    %11 = vsyncpa %s10, 0
    loop: start=0, step=1, limit=10
    $region2: #{tpu_custom_call.1} parent=1 // loop_pre_header
      _
    $region3: #{tpu_custom_call.1} parent=1 // loop_header
      %s13 = sphi 0, %s17
      %p14 = scmp.ge.s32.totalorder %s13, 10
      %s23 = sphi 0, %s25
      %s26 = sphi 0, %s23
      %s27 = sphi 0, %s26
      %s43 = sphi 0, %s27
      %s49 = sphi 0, %s51
      %s52 = sphi 0, %s49
      %s53 = sphi 0, %s52
      %s69 = sphi 0, %s53
    $region4: #{tpu_custom_call.1} parent=1 // loop_header_branch
      %16 = sbr.rel (%p14) target = $region8
    $region5: #{tpu_custom_call.1} parent=1 // loop_body
      %s18 = ssub.s32 %s13, 1
      %s19 = ssub.s32 %s13, 2
      %s20 = sadd.s32 %s13, 1
      %s21 = ssub.s32 %s13, %s20
      %p22 = scmp.eq.s32.totalorder %s21, 0
      %s24 = sadd.s32 %s23, 1
      %s25 = scalar_select %p22, %s23, %s24
      %p28 = pneg %p22
      %p29 = scmp.eq.s32.totalorder %s13, 7
      %p30 = por %p28, %p29
      %p31 = scmp.ne.s32.totalorder %s23, %s26
      %p32 = scmp.eq.s32.totalorder %s13, 0
      %p33 = por %p31, %p32
      %p34 = scmp.ne.s32.totalorder %s23, %s26
      %p35 = scmp.eq.s32.totalorder %s18, 7
      %p36 = por %p34, %p35
      %p37 = scmp.ne.s32.totalorder %s26, %s27
      %p38 = scmp.eq.s32.totalorder %s18, 0
      %p39 = por %p37, %p38
      %p40 = scmp.ne.s32.totalorder %s26, %s27
      %p41 = scmp.eq.s32.totalorder %s19, 7
      %p42 = por %p40, %p41
      %p44 = scmp.ne.s32.totalorder %s27, %s43
      %p45 = scmp.eq.s32.totalorder %s19, 0
      %p46 = por %p44, %p45
      %s47 = ssub.s32 %s13, %s20
      %p48 = scmp.eq.s32.totalorder %s47, 0
      %s50 = sadd.s32 %s49, 1
      %s51 = scalar_select %p48, %s49, %s50
      %p54 = pneg %p48
      %p55 = scmp.eq.s32.totalorder %s13, 7
      %p56 = por %p54, %p55
      %p57 = scmp.ne.s32.totalorder %s49, %s52
      %p58 = scmp.eq.s32.totalorder %s13, 0
      %p59 = por %p57, %p58
      %p60 = scmp.ne.s32.totalorder %s49, %s52
      %p61 = scmp.eq.s32.totalorder %s18, 7
      %p62 = por %p60, %p61
      %p63 = scmp.ne.s32.totalorder %s52, %s53
      %p64 = scmp.eq.s32.totalorder %s18, 0
      %p65 = por %p63, %p64
      %p66 = scmp.ne.s32.totalorder %s52, %s53
      %p67 = scmp.eq.s32.totalorder %s19, 7
      %p68 = por %p66, %p67
      %p70 = scmp.ne.s32.totalorder %s53, %s69
      %p71 = scmp.eq.s32.totalorder %s19, 0
      %p72 = por %p70, %p71
      %p73 = scmp.le.s32.totalorder 1, %s13
      %p74 = scmp.lt.s32.totalorder %s13, 9
      %p75 = pnand %p73, %p74
      %p76 = pneg %p75
      // Predicated region
      $region9: #{tpu_custom_call.1} parent=5 // pred_check
        _
      $region10: #{tpu_custom_call.1} parent=5 // pred_check_branch
        %78 = sbr.rel (%p75) target = $region12
      $region11: #{tpu_custom_call.1} parent=5 // pred_region
        %s79 = ssub.s32 %s13, 1
      $region12: #{tpu_custom_call.1} parent=5 // pred_fallthru
        _
      %p80 = scmp.lt.s32.totalorder %s13, 8
      // Predicated region
      $region13: #{tpu_custom_call.1} parent=5 // pred_check
        %p81 = pneg %p80
      $region14: #{tpu_custom_call.1} parent=5 // pred_check_branch
        %83 = sbr.rel (%p81) target = $region16
      $region15: #{tpu_custom_call.1} parent=5 // pred_region
        // Predicated region
        $region17: #{tpu_custom_call.1} parent=15 // pred_check
          %p84 = pneg %p33
        $region18: #{tpu_custom_call.1} parent=15 // pred_check_branch
          %86 = sbr.rel (%p84) target = $region20
        $region19: #{tpu_custom_call.1} parent=15 // pred_region
          %s87 = sand.u32 %s23, 1
          %s88 = scalar_lea.sflag [#allocation3], %s87
          %s89 = sand.u32 %s23, 1
          %s90 = smul.addr %s89, 96
          %s91 = scalar_lea.vmem [#allocation2], %s90
          %93 = vsyncadd %s88, 0
          %s94 = smul.addr %s13, 12
          %s95 = smul.addr %s94, 8
          %s96 = scalar_lea.hbm %s0, %s95
          %s97 = sshll.u32 %s96, 4
          %s98 = int_to_ptr.hbm [resolvable:$true] %s97
          %s99 = sshll.u32 %s91, 4
          %s100 = int_to_ptr.vmem [resolvable:$true] %s99
          %105 = dma.hbm_to_vmem [thread:$0]  %s98, 1536, %s100, %s88, 128, 128, 8
        $region20: #{tpu_custom_call.1} parent=15 // pred_fallthru
          _
      $region16: #{tpu_custom_call.1} parent=5 // pred_fallthru
        _
      %p106 = scmp.le.s32.totalorder 1, %s13
      %p107 = scmp.lt.s32.totalorder %s13, 9
      %p108 = pnand %p106, %p107
      %p109 = pneg %p108
      // Predicated region
      $region21: #{tpu_custom_call.1} parent=5 // pred_check
        _
      $region22: #{tpu_custom_call.1} parent=5 // pred_check_branch
        %111 = sbr.rel (%p108) target = $region24
      $region23: #{tpu_custom_call.1} parent=5 // pred_region
        %s112 = ssub.s32 %s13, 1
        %s113 = sand.u32 %s26, 1
        %s114 = scalar_lea.sflag [#allocation3], %s113
        %s115 = sand.u32 %s26, 1
        %s116 = smul.addr %s115, 96
        %s117 = scalar_lea.vmem [#allocation2], %s116
        // Predicated region
        $region25: #{tpu_custom_call.1} parent=23 // pred_check
          %p118 = pneg %p39
        $region26: #{tpu_custom_call.1} parent=23 // pred_check_branch
          %120 = sbr.rel (%p118) target = $region28
        $region27: #{tpu_custom_call.1} parent=23 // pred_region
          %122 = dma.done %s114, 1536
        $region28: #{tpu_custom_call.1} parent=23 // pred_fallthru
          _
        %s123 = sand.u32 %s26, 1
        %s124 = scalar_lea.sflag [#allocation3], %s123
        %s125 = sand.u32 %s26, 1
        %s126 = smul.addr %s125, 96
        %s127 = scalar_lea.vmem [#allocation2], %s126
        %p128 = pneg %p39
        %p129 = pneg %p36
        %p130 = pneg %p65
        %p131 = pneg %p62
        %s132 = sand.u32 %s52, 1
        %s133 = scalar_lea.sflag [#allocation4], %s132
        %s134 = sand.u32 %s52, 1
        %s135 = smul.addr %s134, 32
        %s136 = scalar_lea.vmem [#allocation5], %s135
        %v138 = vld [vmem:[%s117] sm:$0xff]
        %v139 = vld [vmem:[%s117 + $0x8] sm:$0xff]
        %v140 = vld [vmem:[%s117 + $0x10] sm:$0xff]
        %v141 = vld [vmem:[%s117 + $0x18] sm:$0xff]
        %v142 = vld [vmem:[%s117 + $0x20] sm:$0xff]
        %v143 = vld [vmem:[%s117 + $0x28] sm:$0xff]
        %v144 = vld [vmem:[%s117 + $0x30] sm:$0xff]
        %v145 = vld [vmem:[%s117 + $0x38] sm:$0xff]
        %v146 = vld [vmem:[%s117 + $0x40] sm:$0xff]
        %v147 = vld [vmem:[%s117 + $0x48] sm:$0xff]
        %v148 = vld [vmem:[%s117 + $0x50] sm:$0xff]
        %v149 = vld [vmem:[%s117 + $0x58] sm:$0xff]
        %v150 = vpack.c.bf16 %v139, %v138
        %v151 = vpack.c.bf16 %v141, %v140
        %v152 = vpack.c.bf16 %v143, %v142
        %v153 = vpack.c.bf16 %v145, %v144
        %154 = vxpose.xlu0.c.b16.start [1/8] %v150, 128
        %155 = vxpose.xlu0.c.b16.cont [2/8] %v151, 128
        %156 = vxpose.xlu0.c.b16.cont [3/8] 0, 128
        %157 = vxpose.xlu0.c.b16.cont [4/8] 0, 128
        %158 = vxpose.xlu0.c.b16.cont [5/8] 0, 128
        %159 = vxpose.xlu0.c.b16.cont [6/8] 0, 128
        %160 = vxpose.xlu0.c.b16.cont [7/8] 0, 128
        %161 = vxpose.xlu0.c.b16.end [8/8] 0, 128
        %v162 = vpop.trf.xlu0
        %v163 = vpop.trf.xlu0
        %v164 = vpop.trf.xlu0
        %v165 = vpop.trf.xlu0
        %v166 = vpop.trf.xlu0
        %v167 = vpop.trf.xlu0
        %v168 = vpop.trf.xlu0
        %v169 = vpop.trf.xlu0
        %vm170 = vcmask 261120
        %v172 = vsel %vm170, %v162, 0
        %v175 = vsel %vm170, %v163, 0
        %v178 = vsel %vm170, %v164, 0
        %v181 = vsel %vm170, %v165, 0
        %v184 = vsel %vm170, %v166, 0
        %v187 = vsel %vm170, %v167, 0
        %v190 = vsel %vm170, %v168, 0
        %v193 = vsel %vm170, %v169, 0
        %195 = vmatpush.bf16.msra.mxu0 0
        %196 = vmatpush.bf16.msra.mxu0 0
        %197 = vmatpush.bf16.msra.mxu0 0
        %198 = vmatpush.bf16.msra.mxu0 0
        %199 = vmatpush.bf16.msra.mxu0 0
        %200 = vmatpush.bf16.msra.mxu0 0
        %201 = vmatpush.bf16.msra.mxu0 %v153
        %202 = vmatpush.bf16.msra.mxu0 %v152
        %203 = vmatmul.bf16.gmra.mxu0 %v172
        %v204 = vpop.f32.mrf.mxu0
        %v205 = vadd.f32 0.0, %v204
        %v206 = vpop.f32.mrf.mxu0
        %v207 = vadd.f32 0.0, %v206
        %208 = vmatmul.bf16.gmra.mxu0 %v175
        %v209 = vpop.f32.mrf.mxu0
        %v210 = vadd.f32 0.0, %v209
        %v211 = vpop.f32.mrf.mxu0
        %v212 = vadd.f32 0.0, %v211
        %213 = vmatmul.bf16.gmra.mxu0 %v178
        %v214 = vpop.f32.mrf.mxu0
        %v215 = vadd.f32 0.0, %v214
        %v216 = vpop.f32.mrf.mxu0
        %v217 = vadd.f32 0.0, %v216
        %218 = vmatmul.bf16.gmra.mxu0 %v181
        %v219 = vpop.f32.mrf.mxu0
        %v220 = vadd.f32 0.0, %v219
        %v221 = vpop.f32.mrf.mxu0
        %v222 = vadd.f32 0.0, %v221
        %223 = vmatmul.bf16.gmra.mxu0 %v184
        %v224 = vpop.f32.mrf.mxu0
        %v225 = vadd.f32 0.0, %v224
        %v226 = vpop.f32.mrf.mxu0
        %v227 = vadd.f32 0.0, %v226
        %228 = vmatmul.bf16.gmra.mxu0 %v187
        %v229 = vpop.f32.mrf.mxu0
        %v230 = vadd.f32 0.0, %v229
        %v231 = vpop.f32.mrf.mxu0
        %v232 = vadd.f32 0.0, %v231
        %233 = vmatmul.bf16.gmra.mxu0 %v190
        %v234 = vpop.f32.mrf.mxu0
        %v235 = vadd.f32 0.0, %v234
        %v236 = vpop.f32.mrf.mxu0
        %v237 = vadd.f32 0.0, %v236
        %238 = vmatmul.bf16.gmra.mxu0 %v193
        %v239 = vpop.f32.mrf.mxu0
        %v240 = vadd.f32 0.0, %v239
        %v241 = vpop.f32.mrf.mxu0
        %v242 = vadd.f32 0.0, %v241
        %243 = vdwg.mxu0
        %v244 = vmul.f32 %v205, 0.17677669
        %v245 = vmul.f32 %v207, 0.17677669
        %v246 = vmul.f32 %v210, 0.17677669
        %v247 = vmul.f32 %v212, 0.17677669
        %v248 = vmul.f32 %v215, 0.17677669
        %v249 = vmul.f32 %v217, 0.17677669
        %v250 = vmul.f32 %v220, 0.17677669
        %v251 = vmul.f32 %v222, 0.17677669
        %v252 = vmul.f32 %v225, 0.17677669
        %v253 = vmul.f32 %v227, 0.17677669
        %v254 = vmul.f32 %v230, 0.17677669
        %v255 = vmul.f32 %v232, 0.17677669
        %v256 = vmul.f32 %v235, 0.17677669
        %v257 = vmul.f32 %v237, 0.17677669
        %v258 = vmul.f32 %v240, 0.17677669
        %v259 = vmul.f32 %v242, 0.17677669
        %260 = vmax.xlane.f32.xlu0 %v244
        %v261 = vpop.xlane.xlu0 %260
        %262 = vmax.xlane.f32.xlu0 %v245
        %v263 = vpop.xlane.xlu0 %262
        %264 = vmax.xlane.f32.xlu0 %v246
        %v265 = vpop.xlane.xlu0 %264
        %266 = vmax.xlane.f32.xlu0 %v247
        %v267 = vpop.xlane.xlu0 %266
        %268 = vmax.xlane.f32.xlu0 %v248
        %v269 = vpop.xlane.xlu0 %268
        %270 = vmax.xlane.f32.xlu0 %v249
        %v271 = vpop.xlane.xlu0 %270
        %272 = vmax.xlane.f32.xlu0 %v250
        %v273 = vpop.xlane.xlu0 %272
        %274 = vmax.xlane.f32.xlu0 %v251
        %v275 = vpop.xlane.xlu0 %274
        %276 = vmax.xlane.f32.xlu0 %v252
        %v277 = vpop.xlane.xlu0 %276
        %278 = vmax.xlane.f32.xlu0 %v253
        %v279 = vpop.xlane.xlu0 %278
        %280 = vmax.xlane.f32.xlu0 %v254
        %v281 = vpop.xlane.xlu0 %280
        %282 = vmax.xlane.f32.xlu0 %v255
        %v283 = vpop.xlane.xlu0 %282
        %284 = vmax.xlane.f32.xlu0 %v256
        %v285 = vpop.xlane.xlu0 %284
        %286 = vmax.xlane.f32.xlu0 %v257
        %v287 = vpop.xlane.xlu0 %286
        %288 = vmax.xlane.f32.xlu0 %v258
        %v289 = vpop.xlane.xlu0 %288
        %290 = vmax.xlane.f32.xlu0 %v259
        %v291 = vpop.xlane.xlu0 %290
        %v292 = vsub.f32 %v244, %v261
        %v293 = vsub.f32 %v245, %v263
        %v294 = vsub.f32 %v246, %v265
        %v295 = vsub.f32 %v247, %v267
        %v296 = vsub.f32 %v248, %v269
        %v297 = vsub.f32 %v249, %v271
        %v298 = vsub.f32 %v250, %v273
        %v299 = vsub.f32 %v251, %v275
        %v300 = vsub.f32 %v252, %v277
        %v301 = vsub.f32 %v253, %v279
        %v302 = vsub.f32 %v254, %v281
        %v303 = vsub.f32 %v255, %v283
        %v304 = vsub.f32 %v256, %v285
        %v305 = vsub.f32 %v257, %v287
        %v306 = vsub.f32 %v258, %v289
        %v307 = vsub.f32 %v259, %v291
        %v308 = vmul.f32 %v292, 1.442695
        %v309 = vpow.pop %v308
        %v310 = vmul.f32 %v293, 1.442695
        %v311 = vpow.pop %v310
        %v312 = vmul.f32 %v294, 1.442695
        %v313 = vpow.pop %v312
        %v314 = vmul.f32 %v295, 1.442695
        %v315 = vpow.pop %v314
        %v316 = vmul.f32 %v296, 1.442695
        %v317 = vpow.pop %v316
        %v318 = vmul.f32 %v297, 1.442695
        %v319 = vpow.pop %v318
        %v320 = vmul.f32 %v298, 1.442695
        %v321 = vpow.pop %v320
        %v322 = vmul.f32 %v299, 1.442695
        %v323 = vpow.pop %v322
        %v324 = vmul.f32 %v300, 1.442695
        %v325 = vpow.pop %v324
        %v326 = vmul.f32 %v301, 1.442695
        %v327 = vpow.pop %v326
        %v328 = vmul.f32 %v302, 1.442695
        %v329 = vpow.pop %v328
        %v330 = vmul.f32 %v303, 1.442695
        %v331 = vpow.pop %v330
        %v332 = vmul.f32 %v304, 1.442695
        %v333 = vpow.pop %v332
        %v334 = vmul.f32 %v305, 1.442695
        %v335 = vpow.pop %v334
        %v336 = vmul.f32 %v306, 1.442695
        %v337 = vpow.pop %v336
        %v338 = vmul.f32 %v307, 1.442695
        %v339 = vpow.pop %v338
        %340 = vadd.xlane.f32.xlu0 %v309
        %v341 = vpop.xlane.xlu0 %340
        %342 = vadd.xlane.f32.xlu0 %v311
        %v343 = vpop.xlane.xlu0 %342
        %344 = vadd.xlane.f32.xlu0 %v313
        %v345 = vpop.xlane.xlu0 %344
        %346 = vadd.xlane.f32.xlu0 %v315
        %v347 = vpop.xlane.xlu0 %346
        %348 = vadd.xlane.f32.xlu0 %v317
        %v349 = vpop.xlane.xlu0 %348
        %350 = vadd.xlane.f32.xlu0 %v319
        %v351 = vpop.xlane.xlu0 %350
        %352 = vadd.xlane.f32.xlu0 %v321
        %v353 = vpop.xlane.xlu0 %352
        %354 = vadd.xlane.f32.xlu0 %v323
        %v355 = vpop.xlane.xlu0 %354
        %356 = vadd.xlane.f32.xlu0 %v325
        %v357 = vpop.xlane.xlu0 %356
        %358 = vadd.xlane.f32.xlu0 %v327
        %v359 = vpop.xlane.xlu0 %358
        %360 = vadd.xlane.f32.xlu0 %v329
        %v361 = vpop.xlane.xlu0 %360
        %362 = vadd.xlane.f32.xlu0 %v331
        %v363 = vpop.xlane.xlu0 %362
        %364 = vadd.xlane.f32.xlu0 %v333
        %v365 = vpop.xlane.xlu0 %364
        %366 = vadd.xlane.f32.xlu0 %v335
        %v367 = vpop.xlane.xlu0 %366
        %368 = vadd.xlane.f32.xlu0 %v337
        %v369 = vpop.xlane.xlu0 %368
        %370 = vadd.xlane.f32.xlu0 %v339
        %v371 = vpop.xlane.xlu0 %370
        %v372 = vrcp.pop %v341
        %v373 = vmul.f32 %v341, %v372
        %v374 = vsub.f32 1.0, %v373
        %v375 = vmul.f32 %v372, %v374
        %v376 = vadd.f32 %v372, %v375
        %vm377 = vweird.f32 %v341
        %vm378 = vweird.f32 %v372
        %vm379 = vmor %vm377, %vm378
        %v380 = vsel %vm379, %v372, %v376
        %v381 = vand.u32 2147483647, %v341
        %vm382 = vcmp.eq.f32.partialorder %v381, 8.507059e+37
        %v383 = vand.u32 %v341, 2147483648
        %v384 = vor.u32 1.1754944e-38, %v383
        %v385 = vsel %vm382, %v384, %v380
        %v386 = vmul.f32 %v309, %v385
        %v387 = vrcp.pop %v343
        %v388 = vmul.f32 %v343, %v387
        %v389 = vsub.f32 1.0, %v388
        %v390 = vmul.f32 %v387, %v389
        %v391 = vadd.f32 %v387, %v390
        %vm392 = vweird.f32 %v343
        %vm393 = vweird.f32 %v387
        %vm394 = vmor %vm392, %vm393
        %v395 = vsel %vm394, %v387, %v391
        %v396 = vand.u32 2147483647, %v343
        %vm397 = vcmp.eq.f32.partialorder %v396, 8.507059e+37
        %v398 = vand.u32 %v343, 2147483648
        %v399 = vor.u32 1.1754944e-38, %v398
        %v400 = vsel %vm397, %v399, %v395
        %v401 = vmul.f32 %v311, %v400
        %v402 = vrcp.pop %v345
        %v403 = vmul.f32 %v345, %v402
        %v404 = vsub.f32 1.0, %v403
        %v405 = vmul.f32 %v402, %v404
        %v406 = vadd.f32 %v402, %v405
        %vm407 = vweird.f32 %v345
        %vm408 = vweird.f32 %v402
        %vm409 = vmor %vm407, %vm408
        %v410 = vsel %vm409, %v402, %v406
        %v411 = vand.u32 2147483647, %v345
        %vm412 = vcmp.eq.f32.partialorder %v411, 8.507059e+37
        %v413 = vand.u32 %v345, 2147483648
        %v414 = vor.u32 1.1754944e-38, %v413
        %v415 = vsel %vm412, %v414, %v410
        %v416 = vmul.f32 %v313, %v415
        %v417 = vrcp.pop %v347
        %v418 = vmul.f32 %v347, %v417
        %v419 = vsub.f32 1.0, %v418
        %v420 = vmul.f32 %v417, %v419
        %v421 = vadd.f32 %v417, %v420
        %vm422 = vweird.f32 %v347
        %vm423 = vweird.f32 %v417
        %vm424 = vmor %vm422, %vm423
        %v425 = vsel %vm424, %v417, %v421
        %v426 = vand.u32 2147483647, %v347
        %vm427 = vcmp.eq.f32.partialorder %v426, 8.507059e+37
        %v428 = vand.u32 %v347, 2147483648
        %v429 = vor.u32 1.1754944e-38, %v428
        %v430 = vsel %vm427, %v429, %v425
        %v431 = vmul.f32 %v315, %v430
        %v432 = vrcp.pop %v349
        %v433 = vmul.f32 %v349, %v432
        %v434 = vsub.f32 1.0, %v433
        %v435 = vmul.f32 %v432, %v434
        %v436 = vadd.f32 %v432, %v435
        %vm437 = vweird.f32 %v349
        %vm438 = vweird.f32 %v432
        %vm439 = vmor %vm437, %vm438
        %v440 = vsel %vm439, %v432, %v436
        %v441 = vand.u32 2147483647, %v349
        %vm442 = vcmp.eq.f32.partialorder %v441, 8.507059e+37
        %v443 = vand.u32 %v349, 2147483648
        %v444 = vor.u32 1.1754944e-38, %v443
        %v445 = vsel %vm442, %v444, %v440
        %v446 = vmul.f32 %v317, %v445
        %v447 = vrcp.pop %v351
        %v448 = vmul.f32 %v351, %v447
        %v449 = vsub.f32 1.0, %v448
        %v450 = vmul.f32 %v447, %v449
        %v451 = vadd.f32 %v447, %v450
        %vm452 = vweird.f32 %v351
        %vm453 = vweird.f32 %v447
        %vm454 = vmor %vm452, %vm453
        %v455 = vsel %vm454, %v447, %v451
        %v456 = vand.u32 2147483647, %v351
        %vm457 = vcmp.eq.f32.partialorder %v456, 8.507059e+37
        %v458 = vand.u32 %v351, 2147483648
        %v459 = vor.u32 1.1754944e-38, %v458
        %v460 = vsel %vm457, %v459, %v455
        %v461 = vmul.f32 %v319, %v460
        %v462 = vrcp.pop %v353
        %v463 = vmul.f32 %v353, %v462
        %v464 = vsub.f32 1.0, %v463
        %v465 = vmul.f32 %v462, %v464
        %v466 = vadd.f32 %v462, %v465
        %vm467 = vweird.f32 %v353
        %vm468 = vweird.f32 %v462
        %vm469 = vmor %vm467, %vm468
        %v470 = vsel %vm469, %v462, %v466
        %v471 = vand.u32 2147483647, %v353
        %vm472 = vcmp.eq.f32.partialorder %v471, 8.507059e+37
        %v473 = vand.u32 %v353, 2147483648
        %v474 = vor.u32 1.1754944e-38, %v473
        %v475 = vsel %vm472, %v474, %v470
        %v476 = vmul.f32 %v321, %v475
        %v477 = vrcp.pop %v355
        %v478 = vmul.f32 %v355, %v477
        %v479 = vsub.f32 1.0, %v478
        %v480 = vmul.f32 %v477, %v479
        %v481 = vadd.f32 %v477, %v480
        %vm482 = vweird.f32 %v355
        %vm483 = vweird.f32 %v477
        %vm484 = vmor %vm482, %vm483
        %v485 = vsel %vm484, %v477, %v481
        %v486 = vand.u32 2147483647, %v355
        %vm487 = vcmp.eq.f32.partialorder %v486, 8.507059e+37
        %v488 = vand.u32 %v355, 2147483648
        %v489 = vor.u32 1.1754944e-38, %v488
        %v490 = vsel %vm487, %v489, %v485
        %v491 = vmul.f32 %v323, %v490
        %v492 = vrcp.pop %v357
        %v493 = vmul.f32 %v357, %v492
        %v494 = vsub.f32 1.0, %v493
        %v495 = vmul.f32 %v492, %v494
        %v496 = vadd.f32 %v492, %v495
        %vm497 = vweird.f32 %v357
        %vm498 = vweird.f32 %v492
        %vm499 = vmor %vm497, %vm498
        %v500 = vsel %vm499, %v492, %v496
        %v501 = vand.u32 2147483647, %v357
        %vm502 = vcmp.eq.f32.partialorder %v501, 8.507059e+37
        %v503 = vand.u32 %v357, 2147483648
        %v504 = vor.u32 1.1754944e-38, %v503
        %v505 = vsel %vm502, %v504, %v500
        %v506 = vmul.f32 %v325, %v505
        %v507 = vrcp.pop %v359
        %v508 = vmul.f32 %v359, %v507
        %v509 = vsub.f32 1.0, %v508
        %v510 = vmul.f32 %v507, %v509
        %v511 = vadd.f32 %v507, %v510
        %vm512 = vweird.f32 %v359
        %vm513 = vweird.f32 %v507
        %vm514 = vmor %vm512, %vm513
        %v515 = vsel %vm514, %v507, %v511
        %v516 = vand.u32 2147483647, %v359
        %vm517 = vcmp.eq.f32.partialorder %v516, 8.507059e+37
        %v518 = vand.u32 %v359, 2147483648
        %v519 = vor.u32 1.1754944e-38, %v518
        %v520 = vsel %vm517, %v519, %v515
        %v521 = vmul.f32 %v327, %v520
        %v522 = vrcp.pop %v361
        %v523 = vmul.f32 %v361, %v522
        %v524 = vsub.f32 1.0, %v523
        %v525 = vmul.f32 %v522, %v524
        %v526 = vadd.f32 %v522, %v525
        %vm527 = vweird.f32 %v361
        %vm528 = vweird.f32 %v522
        %vm529 = vmor %vm527, %vm528
        %v530 = vsel %vm529, %v522, %v526
        %v531 = vand.u32 2147483647, %v361
        %vm532 = vcmp.eq.f32.partialorder %v531, 8.507059e+37
        %v533 = vand.u32 %v361, 2147483648
        %v534 = vor.u32 1.1754944e-38, %v533
        %v535 = vsel %vm532, %v534, %v530
        %v536 = vmul.f32 %v329, %v535
        %v537 = vrcp.pop %v363
        %v538 = vmul.f32 %v363, %v537
        %v539 = vsub.f32 1.0, %v538
        %v540 = vmul.f32 %v537, %v539
        %v541 = vadd.f32 %v537, %v540
        %vm542 = vweird.f32 %v363
        %vm543 = vweird.f32 %v537
        %vm544 = vmor %vm542, %vm543
        %v545 = vsel %vm544, %v537, %v541
        %v546 = vand.u32 2147483647, %v363
        %vm547 = vcmp.eq.f32.partialorder %v546, 8.507059e+37
        %v548 = vand.u32 %v363, 2147483648
        %v549 = vor.u32 1.1754944e-38, %v548
        %v550 = vsel %vm547, %v549, %v545
        %v551 = vmul.f32 %v331, %v550
        %v552 = vrcp.pop %v365
        %v553 = vmul.f32 %v365, %v552
        %v554 = vsub.f32 1.0, %v553
        %v555 = vmul.f32 %v552, %v554
        %v556 = vadd.f32 %v552, %v555
        %vm557 = vweird.f32 %v365
        %vm558 = vweird.f32 %v552
        %vm559 = vmor %vm557, %vm558
        %v560 = vsel %vm559, %v552, %v556
        %v561 = vand.u32 2147483647, %v365
        %vm562 = vcmp.eq.f32.partialorder %v561, 8.507059e+37
        %v563 = vand.u32 %v365, 2147483648
        %v564 = vor.u32 1.1754944e-38, %v563
        %v565 = vsel %vm562, %v564, %v560
        %v566 = vmul.f32 %v333, %v565
        %v567 = vrcp.pop %v367
        %v568 = vmul.f32 %v367, %v567
        %v569 = vsub.f32 1.0, %v568
        %v570 = vmul.f32 %v567, %v569
        %v571 = vadd.f32 %v567, %v570
        %vm572 = vweird.f32 %v367
        %vm573 = vweird.f32 %v567
        %vm574 = vmor %vm572, %vm573
        %v575 = vsel %vm574, %v567, %v571
        %v576 = vand.u32 2147483647, %v367
        %vm577 = vcmp.eq.f32.partialorder %v576, 8.507059e+37
        %v578 = vand.u32 %v367, 2147483648
        %v579 = vor.u32 1.1754944e-38, %v578
        %v580 = vsel %vm577, %v579, %v575
        %v581 = vmul.f32 %v335, %v580
        %v582 = vrcp.pop %v369
        %v583 = vmul.f32 %v369, %v582
        %v584 = vsub.f32 1.0, %v583
        %v585 = vmul.f32 %v582, %v584
        %v586 = vadd.f32 %v582, %v585
        %vm587 = vweird.f32 %v369
        %vm588 = vweird.f32 %v582
        %vm589 = vmor %vm587, %vm588
        %v590 = vsel %vm589, %v582, %v586
        %v591 = vand.u32 2147483647, %v369
        %vm592 = vcmp.eq.f32.partialorder %v591, 8.507059e+37
        %v593 = vand.u32 %v369, 2147483648
        %v594 = vor.u32 1.1754944e-38, %v593
        %v595 = vsel %vm592, %v594, %v590
        %v596 = vmul.f32 %v337, %v595
        %v597 = vrcp.pop %v371
        %v598 = vmul.f32 %v371, %v597
        %v599 = vsub.f32 1.0, %v598
        %v600 = vmul.f32 %v597, %v599
        %v601 = vadd.f32 %v597, %v600
        %vm602 = vweird.f32 %v371
        %vm603 = vweird.f32 %v597
        %vm604 = vmor %vm602, %vm603
        %v605 = vsel %vm604, %v597, %v601
        %v606 = vand.u32 2147483647, %v371
        %vm607 = vcmp.eq.f32.partialorder %v606, 8.507059e+37
        %v608 = vand.u32 %v371, 2147483648
        %v609 = vor.u32 1.1754944e-38, %v608
        %v610 = vsel %vm607, %v609, %v605
        %v611 = vmul.f32 %v339, %v610
        %v612 = vpack.c.bf16 %v147, %v146
        %v613 = vpack.c.bf16 %v149, %v148
        %v614 = vpack.c.bf16 %v401, %v386
        %v615 = vpack.c.bf16 %v431, %v416
        %v616 = vpack.c.bf16 %v461, %v446
        %v617 = vpack.c.bf16 %v491, %v476
        %v618 = vpack.c.bf16 %v521, %v506
        %v619 = vpack.c.bf16 %v551, %v536
        %v620 = vpack.c.bf16 %v581, %v566
        %v621 = vpack.c.bf16 %v611, %v596
        %622 = vmatpush.bf16.xpose.msra.mxu0 %v621
        %623 = vmatpush.bf16.xpose.msra.mxu0 %v620
        %624 = vmatpush.bf16.xpose.msra.mxu0 %v619
        %625 = vmatpush.bf16.xpose.msra.mxu0 %v618
        %626 = vmatpush.bf16.xpose.msra.mxu0 %v617
        %627 = vmatpush.bf16.xpose.msra.mxu0 %v616
        %628 = vmatpush.bf16.xpose.msra.mxu0 %v615
        %629 = vmatpush.bf16.xpose.msra.mxu0 %v614
        %630 = vmatmul.bf16.gmra.mxu0 %v612
        %v631 = vpop.f32.mrf.mxu0
        %v632 = vadd.f32 0.0, %v631
        %v633 = vpop.f32.mrf.mxu0
        %v634 = vadd.f32 0.0, %v633
        %635 = vmatmul.bf16.gmra.mxu0 %v613
        %v636 = vpop.f32.mrf.mxu0
        %v637 = vadd.f32 0.0, %v636
        %v638 = vpop.f32.mrf.mxu0
        %v639 = vadd.f32 0.0, %v638
        %640 = vdwg.mxu0
        %641 = vst [vmem:[%s136] sm:$0xff] %v632
        %642 = vst [vmem:[%s136 + $0x8] sm:$0xff] %v634
        %643 = vst [vmem:[%s136 + $0x10] sm:$0xff] %v637
        %644 = vst [vmem:[%s136 + $0x18] sm:$0xff] %v639
        %s645 = sand.u32 %s52, 1
        %s646 = scalar_lea.sflag [#allocation4], %s645
        %s647 = sand.u32 %s52, 1
        %s648 = smul.addr %s647, 32
        %s649 = scalar_lea.vmem [#allocation5], %s648
        // Predicated region
        $region29: #{tpu_custom_call.1} parent=23 // pred_check
          %p650 = pneg %p62
        $region30: #{tpu_custom_call.1} parent=23 // pred_check_branch
          %652 = sbr.rel (%p650) target = $region32
        $region31: #{tpu_custom_call.1} parent=23 // pred_region
          %654 = vsyncadd %s646, 0
          %s655 = smul.addr %s18, 4
          %s656 = smul.addr %s655, 8
          %s657 = scalar_lea.hbm %s1, %s656
          %s658 = sshll.u32 %s649, 4
          %s659 = int_to_ptr.vmem [resolvable:$true] %s658
          %s660 = sshll.u32 %s657, 4
          %s661 = int_to_ptr.hbm [resolvable:$true] %s660
          %666 = dma.vmem_to_hbm [thread:$0]  %s659, 512, %s661, %s646, 128, 128, 8
        $region32: #{tpu_custom_call.1} parent=23 // pred_fallthru
          _
      $region24: #{tpu_custom_call.1} parent=5 // pred_fallthru
        _
      %p667 = scmp.le.s32.totalorder 2, %s13
      // Predicated region
      $region33: #{tpu_custom_call.1} parent=5 // pred_check
        %p668 = pneg %p667
      $region34: #{tpu_custom_call.1} parent=5 // pred_check_branch
        %670 = sbr.rel (%p668) target = $region36
      $region35: #{tpu_custom_call.1} parent=5 // pred_region
        %s671 = ssub.s32 %s13, 2
        // Predicated region
        $region37: #{tpu_custom_call.1} parent=35 // pred_check
          %p672 = pneg %p68
        $region38: #{tpu_custom_call.1} parent=35 // pred_check_branch
          %674 = sbr.rel (%p672) target = $region40
        $region39: #{tpu_custom_call.1} parent=35 // pred_region
          %s675 = sand.u32 %s53, 1
          %s676 = scalar_lea.sflag [#allocation4], %s675
          %s677 = sand.u32 %s53, 1
          %s678 = smul.addr %s677, 32
          %s679 = scalar_lea.vmem [#allocation5], %s678
          %681 = dma.done %s676, 512
        $region40: #{tpu_custom_call.1} parent=35 // pred_fallthru
          _
      $region36: #{tpu_custom_call.1} parent=5 // pred_fallthru
        _
    $region6: #{tpu_custom_call.1} parent=1 // loop_footer
      %s17 = sadd.s32 1, %s13
    $region7: #{tpu_custom_call.1} parent=1 // loop_footer_branch
      %12 = sbr.rel target = $region3
    $region8: #{tpu_custom_call.1} parent=1 // loop_exit
      _
    %682 = vsyncpa [#allocation3], 1
    %s683 = scalar_lea.sflag [#allocation3], 1
    %684 = vsyncpa %s683, 1
    %685 = vsyncpa [#allocation4], 1
    %s686 = scalar_lea.sflag [#allocation4], 1
    %687 = vsyncpa %s686, 1

</llo_original>
